<compile_context>
chip_gen: v5e
topology: v5e:2x2
jax: 0.10.0
libtpu: 0.0.40
codegen_flags: <defaults>
</compile_context>

<pallas_src>
import functools

import jax
import jax.numpy as jnp
from jax import lax
from jax.experimental import pallas as pl
from jax.experimental.pallas import tpu as pltpu


def _round_up(n: int, m: int) -> int:
    return ((n + m - 1) // m) * m


def _diversity_kernel(xr_ref, xc_ref, out_ref, acc_ref, *,
                      margin: float, batch: int, block: int, nblocks: int,
                      compute_dtype):
    i = pl.program_id(0)          # row block
    j = pl.program_id(1)          # col block (inner / accumulation axis)
    last = nblocks - 1            # static
    padded = (nblocks * block) != batch   # static: padded rows/cols exist

    @pl.when(j == 0)
    def _init():
        acc_ref[...] = jnp.zeros_like(acc_ref)

    def tile_hinge():
        xr = xr_ref[...]                                        # (TB, Dp) f32
        xc = xc_ref[...]                                        # (TB, Dp) f32
        # Squared norms stay in f32 even when the Gram operands are cast down
        # (keeps the d_i + d_j - 2*gram cancellation as accurate as possible).
        sqr = jnp.sum(xr * xr, axis=1, keepdims=True)           # (TB, 1)
        sqc = jnp.sum(xc * xc, axis=1, keepdims=True)           # (TB, 1)
        gram = lax.dot_general(
            xr.astype(compute_dtype), xc.astype(compute_dtype),
            dimension_numbers=(((1,), (1,)), ((), ())),          # contract D of both
            preferred_element_type=jnp.float32)                  # (TB, TB)
        dist = sqr + sqc.T - 2.0 * gram
        dist = 1e-6 + jnp.sqrt(0.001 + dist)
        return jnp.maximum(margin - dist, 0.0)

    @pl.when(i < j)
    def _upper():                         # strictly-upper off-diagonal block
        h = tile_hinge()
        if padded:                        # only needed when B % TB != 0
            gcol = j * block + lax.broadcasted_iota(jnp.int32, (1, block), 1)
            h = jnp.where((j != last) | (gcol < batch), h, 0.0)
        acc_ref[...] += h

    @pl.when(i == j)
    def _diag():                          # diagonal block: strict-triu mask
        h = tile_hinge()
        grow = i * block + lax.broadcasted_iota(jnp.int32, (block, 1), 0)
        gcol = j * block + lax.broadcasted_iota(jnp.int32, (1, block), 1)
        mask = grow < gcol                # broadcast at the compare
        if padded:
            mask = mask & (gcol < batch)  # drop padded rows/cols
        acc_ref[...] += jnp.where(mask, h, 0.0)

    # (i > j blocks: both branches skipped — no MXU/VPU work, no extra DMA
    #  thanks to the max(i, j) col-block index_map.)

    @pl.when(j == last)
    def _finalize():
        # Single cross-lane reduction per row block; broadcast into the
        # (1, 8, 128) lane-dense output block for this row block.
        out_ref[...] = jnp.zeros_like(out_ref) + jnp.sum(acc_ref[...])


def diversity_loss(x: jax.Array, margin: float = 1.0, *,
                   block_rows: int = 512,
                   compute_dtype=jnp.float32) -> jax.Array:
    """Pallas implementation of Diversity.forward.  x: (B, D)."""
    x = x.astype(jnp.float32)
    B, D = x.shape

    # Lane-dense feature dim (zero-padding changes neither norms nor the Gram).
    Dp = _round_up(D, 128)
    # Row/col tile: multiple of 8 sublanes, capped at block_rows.
    TB = min(_round_up(block_rows, 8), _round_up(B, 8))
    Bp = _round_up(B, TB)
    nb = Bp // TB
    if (Bp, Dp) != (B, D):
        x = jnp.pad(x, ((0, Bp - B), (0, Dp - D)))

    kernel = functools.partial(
        _diversity_kernel, margin=float(margin), batch=B, block=TB,
        nblocks=nb, compute_dtype=compute_dtype)

    out = pl.pallas_call(
        kernel,
        out_shape=jax.ShapeDtypeStruct((nb, 8, 128), jnp.float32),
        grid_spec=pltpu.PrefetchScalarGridSpec(
            num_scalar_prefetch=0,
            grid=(nb, nb),
            in_specs=[
                # Row block: constant over the inner j loop -> fetched once.
                pl.BlockSpec((TB, Dp), lambda i, j: (i, 0)),
                # Col block: max(i, j) keeps the buffer on an already-resident
                # block during skipped lower-triangle steps (no wasted DMA).
                pl.BlockSpec((TB, Dp), lambda i, j: (jnp.maximum(i, j), 0)),
            ],
            out_specs=pl.BlockSpec((1, 8, 128), lambda i, j: (i, 0, 0)),
            scratch_shapes=[pltpu.VMEM((TB, TB), jnp.float32)],
        ),
        compiler_params=pltpu.CompilerParams(
            # Row blocks are independent (each writes its own partial) ->
            # megacore-parallel on 2-TC chips; j carries the accumulation.
            dimension_semantics=("parallel", "arbitrary")),
    )(x, x)

    # Mean over the full B x B matrix (incl. zeroed diagonal / lower triangle),
    # matching torch.mean after triu.
    return jnp.sum(out[:, 0, 0]) * (1.0 / (B * B))


def _diversity_ref(x: jax.Array, margin: float = 1.0) -> jax.Array:
    """Pure-JAX reference mirroring the PyTorch module (f32 throughout)."""
    x = x.astype(jnp.float32)
    B = x.shape[0]
    d = jnp.sum(x * x, axis=1, keepdims=True)
    gram = jnp.dot(x, x.T, precision=lax.Precision.HIGHEST)
    distmat = d + d.T - 2.0 * gram
    distmat = 1e-6 + jnp.sqrt(0.001 + distmat)
    eye = jnp.eye(B, dtype=bool)
    distmat = jnp.where(eye, margin + 1.0, distmat)
    hinge = jnp.where(margin - distmat < 0.0, 0.0 * distmat, margin - distmat)
    hinge = jnp.triu(hinge)
    return jnp.mean(hinge)


if __name__ == "__main__":
    key = jax.random.PRNGKey(0)
    k1, k2 = jax.random.split(key)

    # Case 1: single-block path (B=8, D=32); scaled so some hinges are active.
    x1 = 0.1 * jax.random.normal(k1, (8, 32), dtype=jnp.float32)
    got1 = jax.block_until_ready(diversity_loss(x1, margin=1.0))
    ref1 = jax.block_until_ready(_diversity_ref(x1, margin=1.0))
    assert jnp.allclose(got1, ref1, atol=2e-5, rtol=1e-4), (got1, ref1)

    # Case 2: multi-block tiled path with B, D not multiples of the tile size
    # (exercises block-triangle skipping, diag masking and padding masks).
    x2 = 0.1 * jax.random.normal(k2, (20, 40), dtype=jnp.float32)
    got2 = jax.block_until_ready(diversity_loss(x2, margin=1.0, block_rows=8))
    ref2 = jax.block_until_ready(_diversity_ref(x2, margin=1.0))
    assert jnp.allclose(got2, ref2, atol=2e-5, rtol=1e-4), (got2, ref2)

    # Case 3: bf16 Gram operands (v6e/v7x MXU-rate option), f32 accumulation.
    got3 = jax.block_until_ready(
        diversity_loss(x1, margin=1.0, compute_dtype=jnp.bfloat16))
    assert jnp.allclose(got3, ref1, atol=5e-3, rtol=5e-2), (got3, ref1)

    print("KERNEL_OK")
</pallas_src>

<mosaic_0001>
module attributes {stable_mosaic.version = 11 : i64} {
  func.func @_diversity_kernel(%arg0: i32, %arg1: i32, %arg2: memref<8x128xf32, #tpu.memory_space<vmem>>, %arg3: memref<8x128xf32, #tpu.memory_space<vmem>>, %arg4: memref<1x8x128xf32, #tpu.memory_space<vmem>>, %arg5: memref<8x8xf32, #tpu.memory_space<vmem>>) attributes {dimension_semantics = [#tpu.dimension_semantics<parallel>, #tpu.dimension_semantics<arbitrary>], iteration_bounds = array<i64: 1, 1>, scalar_prefetch = 0 : i64, scratch_operands = 1 : i64, tpu.core_type = #tpu.core_type<tc>, window_params = [{transform_indices = @transform_0, window_bounds = array<i64: 8, 128>}, {transform_indices = @transform_1, window_bounds = array<i64: 8, 128>}, {transform_indices = @transform_2, window_bounds = array<i64: 1, 8, 128>}]} {
    %c0_i32 = arith.constant 0 : i32
    %0 = arith.cmpi eq, %arg1, %c0_i32 : i32
    %1 = arith.extui %0 : i1 to i32
    %c0_i32_0 = arith.constant 0 : i32
    %2 = arith.cmpi ne, %1, %c0_i32_0 : i32
    scf.if %2 {
      %cst = arith.constant 0.000000e+00 : f32
      %12 = vector.broadcast %cst : f32 to vector<8x8xf32>
      %c0 = arith.constant 0 : index
      %c0_5 = arith.constant 0 : index
      %13 = vector.load %arg5[%c0, %c0_5] : memref<8x8xf32, #tpu.memory_space<vmem>>, vector<8x8xf32>
      tpu.vector_store %arg5[%c0, %c0_5], %12 {strides = array<i32>} : memref<8x8xf32, #tpu.memory_space<vmem>>, vector<8x8xf32>,
    } else {
    }
    %3 = arith.cmpi slt, %arg0, %arg1 : i32
    %4 = arith.extui %3 : i1 to i32
    %c0_i32_1 = arith.constant 0 : i32
    %5 = arith.cmpi ne, %4, %c0_i32_1 : i32
    scf.if %5 {
      %c0 = arith.constant 0 : index
      %c0_5 = arith.constant 0 : index
      %12 = vector.load %arg2[%c0, %c0_5] : memref<8x128xf32, #tpu.memory_space<vmem>>, vector<8x128xf32>
      %c0_6 = arith.constant 0 : index
      %c0_7 = arith.constant 0 : index
      %13 = vector.load %arg3[%c0_6, %c0_7] : memref<8x128xf32, #tpu.memory_space<vmem>>, vector<8x128xf32>
      %14 = arith.mulf %12, %12 : vector<8x128xf32>
      %cst = arith.constant dense<0.000000e+00> : vector<8xf32>
      %15 = vector.multi_reduction <add>, %14, %cst [1] : vector<8x128xf32> to vector<8xf32>
      %16 = vector.shape_cast %15 : vector<8xf32> to vector<8x1xf32>
      %17 = arith.mulf %13, %13 : vector<8x128xf32>
      %cst_8 = arith.constant dense<0.000000e+00> : vector<8xf32>
      %18 = vector.multi_reduction <add>, %17, %cst_8 [1] : vector<8x128xf32> to vector<8xf32>
      %19 = vector.shape_cast %18 : vector<8xf32> to vector<8x1xf32>
      %cst_9 = arith.constant dense<0.000000e+00> : vector<8x8xf32>
      %20 = tpu.matmul %12, %13, %cst_9 {dimension_numbers = #tpu.dot_dimension_numbers<[1], [1], [0], [0], [0, 0, 1, 0], [], []>} : vector<8x128xf32>, vector<8x128xf32>, vector<8x8xf32> -> vector<8x8xf32>
      %21 = tpu.transpose %19, [1, 0] : vector<8x1xf32> -> vector<1x8xf32>
      %22 = vector.broadcast %16 : vector<8x1xf32> to vector<8x8xf32>
      %23 = vector.broadcast %21 : vector<1x8xf32> to vector<8x8xf32>
      %24 = arith.addf %22, %23 : vector<8x8xf32>
      %cst_10 = arith.constant 2.000000e+00 : f32
      %25 = vector.broadcast %cst_10 : f32 to vector<8x8xf32>
      %26 = arith.mulf %25, %20 : vector<8x8xf32>
      %27 = arith.subf %24, %26 : vector<8x8xf32>
      %cst_11 = arith.constant 1.000000e-03 : f32
      %28 = vector.broadcast %cst_11 : f32 to vector<8x8xf32>
      %29 = arith.addf %28, %27 : vector<8x8xf32>
      %30 = math.sqrt %29 : vector<8x8xf32>
      %cst_12 = arith.constant 9.99999997E-7 : f32
      %31 = vector.broadcast %cst_12 : f32 to vector<8x8xf32>
      %32 = arith.addf %31, %30 : vector<8x8xf32>
      %cst_13 = arith.constant 1.000000e+00 : f32
      %33 = vector.broadcast %cst_13 : f32 to vector<8x8xf32>
      %34 = arith.subf %33, %32 : vector<8x8xf32>
      %cst_14 = arith.constant 0.000000e+00 : f32
      %35 = vector.broadcast %cst_14 : f32 to vector<8x8xf32>
      %36 = arith.maximumf %34, %35 : vector<8x8xf32>
      %c0_15 = arith.constant 0 : index
      %c0_16 = arith.constant 0 : index
      %37 = vector.load %arg5[%c0_15, %c0_16] : memref<8x8xf32, #tpu.memory_space<vmem>>, vector<8x8xf32>
      %38 = arith.addf %37, %36 : vector<8x8xf32>
      %c0_17 = arith.constant 0 : index
      %c0_18 = arith.constant 0 : index
      %39 = vector.load %arg5[%c0_17, %c0_18] : memref<8x8xf32, #tpu.memory_space<vmem>>, vector<8x8xf32>
      tpu.vector_store %arg5[%c0_17, %c0_18], %38 {strides = array<i32>} : memref<8x8xf32, #tpu.memory_space<vmem>>, vector<8x8xf32>,
    } else {
    }
    %6 = arith.cmpi eq, %arg0, %arg1 : i32
    %7 = arith.extui %6 : i1 to i32
    %c0_i32_2 = arith.constant 0 : i32
    %8 = arith.cmpi ne, %7, %c0_i32_2 : i32
    scf.if %8 {
      %c0 = arith.constant 0 : index
      %c0_5 = arith.constant 0 : index
      %12 = vector.load %arg2[%c0, %c0_5] : memref<8x128xf32, #tpu.memory_space<vmem>>, vector<8x128xf32>
      %c0_6 = arith.constant 0 : index
      %c0_7 = arith.constant 0 : index
      %13 = vector.load %arg3[%c0_6, %c0_7] : memref<8x128xf32, #tpu.memory_space<vmem>>, vector<8x128xf32>
      %14 = arith.mulf %12, %12 : vector<8x128xf32>
      %cst = arith.constant dense<0.000000e+00> : vector<8xf32>
      %15 = vector.multi_reduction <add>, %14, %cst [1] : vector<8x128xf32> to vector<8xf32>
      %16 = vector.shape_cast %15 : vector<8xf32> to vector<8x1xf32>
      %17 = arith.mulf %13, %13 : vector<8x128xf32>
      %cst_8 = arith.constant dense<0.000000e+00> : vector<8xf32>
      %18 = vector.multi_reduction <add>, %17, %cst_8 [1] : vector<8x128xf32> to vector<8xf32>
      %19 = vector.shape_cast %18 : vector<8xf32> to vector<8x1xf32>
      %cst_9 = arith.constant dense<0.000000e+00> : vector<8x8xf32>
      %20 = tpu.matmul %12, %13, %cst_9 {dimension_numbers = #tpu.dot_dimension_numbers<[1], [1], [0], [0], [0, 0, 1, 0], [], []>} : vector<8x128xf32>, vector<8x128xf32>, vector<8x8xf32> -> vector<8x8xf32>
      %21 = tpu.transpose %19, [1, 0] : vector<8x1xf32> -> vector<1x8xf32>
      %22 = vector.broadcast %16 : vector<8x1xf32> to vector<8x8xf32>
      %23 = vector.broadcast %21 : vector<1x8xf32> to vector<8x8xf32>
      %24 = arith.addf %22, %23 : vector<8x8xf32>
      %cst_10 = arith.constant 2.000000e+00 : f32
      %25 = vector.broadcast %cst_10 : f32 to vector<8x8xf32>
      %26 = arith.mulf %25, %20 : vector<8x8xf32>
      %27 = arith.subf %24, %26 : vector<8x8xf32>
      %cst_11 = arith.constant 1.000000e-03 : f32
      %28 = vector.broadcast %cst_11 : f32 to vector<8x8xf32>
      %29 = arith.addf %28, %27 : vector<8x8xf32>
      %30 = math.sqrt %29 : vector<8x8xf32>
      %cst_12 = arith.constant 9.99999997E-7 : f32
      %31 = vector.broadcast %cst_12 : f32 to vector<8x8xf32>
      %32 = arith.addf %31, %30 : vector<8x8xf32>
      %cst_13 = arith.constant 1.000000e+00 : f32
      %33 = vector.broadcast %cst_13 : f32 to vector<8x8xf32>
      %34 = arith.subf %33, %32 : vector<8x8xf32>
      %cst_14 = arith.constant 0.000000e+00 : f32
      %35 = vector.broadcast %cst_14 : f32 to vector<8x8xf32>
      %36 = arith.maximumf %34, %35 : vector<8x8xf32>
      %c8_i32 = arith.constant 8 : i32
      %37 = arith.muli %arg0, %c8_i32 : i32
      %38 = tpu.iota {dimensions = array<i32: 0>} : vector<8x1xi32>
      %39 = vector.broadcast %37 : i32 to vector<8x1xi32>
      %40 = arith.addi %39, %38 : vector<8x1xi32>
      %c8_i32_15 = arith.constant 8 : i32
      %41 = arith.muli %arg1, %c8_i32_15 : i32
      %42 = tpu.iota {dimensions = array<i32: 1>} : vector<1x8xi32>
      %43 = vector.broadcast %41 : i32 to vector<1x8xi32>
      %44 = arith.addi %43, %42 : vector<1x8xi32>
      %45 = vector.broadcast %40 : vector<8x1xi32> to vector<8x8xi32>
      %46 = vector.broadcast %44 : vector<1x8xi32> to vector<8x8xi32>
      %47 = arith.cmpi slt, %45, %46 : vector<8x8xi32>
      %c0_16 = arith.constant 0 : index
      %c0_17 = arith.constant 0 : index
      %48 = vector.load %arg5[%c0_16, %c0_17] : memref<8x8xf32, #tpu.memory_space<vmem>>, vector<8x8xf32>
      %cst_18 = arith.constant 0.000000e+00 : f32
      %49 = vector.broadcast %cst_18 : f32 to vector<8x8xf32>
      %50 = arith.select %47, %36, %49 : vector<8x8xi1>, vector<8x8xf32>
      %51 = arith.addf %48, %50 : vector<8x8xf32>
      %c0_19 = arith.constant 0 : index
      %c0_20 = arith.constant 0 : index
      %52 = vector.load %arg5[%c0_19, %c0_20] : memref<8x8xf32, #tpu.memory_space<vmem>>, vector<8x8xf32>
      tpu.vector_store %arg5[%c0_19, %c0_20], %51 {strides = array<i32>} : memref<8x8xf32, #tpu.memory_space<vmem>>, vector<8x8xf32>,
    } else {
    }
    %c0_i32_3 = arith.constant 0 : i32
    %9 = arith.cmpi eq, %arg1, %c0_i32_3 : i32
    %10 = arith.extui %9 : i1 to i32
    %c0_i32_4 = arith.constant 0 : i32
    %11 = arith.cmpi ne, %10, %c0_i32_4 : i32
    scf.if %11 {
      %cst = arith.constant 0.000000e+00 : f32
      %12 = vector.broadcast %cst : f32 to vector<1x8x128xf32>
      %c0 = arith.constant 0 : index
      %c0_5 = arith.constant 0 : index
      %13 = vector.load %arg5[%c0, %c0_5] : memref<8x8xf32, #tpu.memory_space<vmem>>, vector<8x8xf32>
      %14 = vector.shape_cast %13 : vector<8x8xf32> to vector<1x8x8xf32>
      %cst_6 = arith.constant dense<0.000000e+00> : vector<1xf32>
      %15 = vector.multi_reduction <add>, %14, %cst_6 [1, 2] : vector<1x8x8xf32> to vector<1xf32>
      %16 = vector.shape_cast %15 : vector<1xf32> to vector<1x1x1xf32>
      %17 = vector.extract %16[0, 0, 0] : f32 from vector<1x1x1xf32>
      %18 = vector.broadcast %17 : f32 to vector<1x8x128xf32>
      %19 = arith.addf %12, %18 : vector<1x8x128xf32>
      %c0_7 = arith.constant 0 : index
      %c0_8 = arith.constant 0 : index
      %c0_9 = arith.constant 0 : index
      %20 = vector.load %arg4[%c0_7, %c0_8, %c0_9] : memref<1x8x128xf32, #tpu.memory_space<vmem>>, vector<1x8x128xf32>
      tpu.vector_store %arg4[%c0_7, %c0_8, %c0_9], %19 {strides = array<i32>} : memref<1x8x128xf32, #tpu.memory_space<vmem>>, vector<1x8x128xf32>,
    } else {
    }
    return
  }
  func.func @transform_0(%arg0: i32, %arg1: i32) -> (i32, i32) {
    %c0_i32 = arith.constant 0 : i32
    %c0_i32_0 = arith.constant 0 : i32
    return %arg0, %c0_i32 : i32, i32
  }
  func.func @transform_1(%arg0: i32, %arg1: i32) -> (i32, i32) {
    %0 = arith.maxsi %arg0, %arg1 : i32
    %c0_i32 = arith.constant 0 : i32
    %c0_i32_0 = arith.constant 0 : i32
    return %0, %c0_i32 : i32, i32
  }
  func.func @transform_2(%arg0: i32, %arg1: i32) -> (i32, i32, i32) {
    %c0_i32 = arith.constant 0 : i32
    %c0_i32_0 = arith.constant 0 : i32
    %c0_i32_1 = arith.constant 0 : i32
    return %arg0, %c0_i32, %c0_i32_0 : i32, i32, i32
  }
}

</mosaic_0001>

<llo_original>
// kernel: tpu_custom_call.1
$region0: #{tpu_custom_call.1}
  #allocation0 [shape = 'u32[]', space=smem, size = 0x4, offset = 0x4, fixed_abs, tag = 'smem constant byte address 0x4 - core index']
  #allocation1 [shape = 'u32[72,128]{1,0:T(1,128)}', space=vmem, size = 0x9000, scoped, tag = 'internal scratch']
  #allocation2 [shape = 'f32[8,8]{1,0:T(8,128)}', space=vmem, size = 0x1000, scoped, tag = 'scratch operand']
  %s0 = inlined_call_operand.hbm [shape: f32[8,128], index: 0, kind: input, shape index: {}]
  %s1 = inlined_call_operand.hbm [shape: f32[8,128], index: 1, kind: input, shape index: {}]
  %s2 = inlined_call_operand.hbm [shape: f32[1,8,128], index: 2, kind: output, shape index: {}]
  %s3 = sld [smem:[#allocation0]]
  $region42: #{tpu_custom_call.1} parent=0
    _
  %s5 = ssub.s32 1, %s3
  %s6 = scalar_select 0, %s5, %s3
  $region1: #{tpu_custom_call.1} parent=0
    #allocation3 [shape = 'u8[4096]{0}', space=vmem, size = 0x1000, scoped, tag = 'input window, operand 0, single buffered']
    #allocation4 [shape = 's32[1]{0}', space=sflag, size = 0x4, scoped, tag = 'scoped memory for tpu_custom_call.1']
    #allocation5 [shape = 's32[1]{0}', space=sflag, size = 0x4, scoped, tag = 'scoped memory for tpu_custom_call.1']
    #allocation6 [shape = 'u8[4096]{0}', space=vmem, size = 0x1000, scoped, tag = 'input window, operand 1, single buffered']
    #allocation7 [shape = 's32[1]{0}', space=sflag, size = 0x4, scoped, tag = 'scoped memory for tpu_custom_call.1']
    #allocation8 [shape = 'u8[4096]{0}', space=vmem, size = 0x1000, scoped, tag = 'output window, operand 0, single buffered']
    %7 = vsyncpa [#allocation4], 0
    %8 = vsyncpa [#allocation7], 0
    %9 = vsyncpa [#allocation5], 0
    // Predicated region
    $region2: #{tpu_custom_call.1} parent=1 // pred_check
      _
    $region3: #{tpu_custom_call.1} parent=1 // pred_check_branch
      %11 = sbr.rel (0) target = $region5
    $region4: #{tpu_custom_call.1} parent=1 // pred_region
      %13 = vsyncadd [#allocation4], 0
      %s15 = sshll.u32 %s0, 4
      %s16 = int_to_ptr.hbm [resolvable:$true] %s15
      %s17 = sshll.u32 [#allocation3], 4
      %s18 = int_to_ptr.vmem [resolvable:$true] %s17
      %20 = dma.hbm_to_vmem [thread:$0]  %s16, 128, %s18, [#allocation4]
    $region5: #{tpu_custom_call.1} parent=1 // pred_fallthru
      _
    // Predicated region
    $region6: #{tpu_custom_call.1} parent=1 // pred_check
      _
    $region7: #{tpu_custom_call.1} parent=1 // pred_check_branch
      %22 = sbr.rel (0) target = $region9
    $region8: #{tpu_custom_call.1} parent=1 // pred_region
      %24 = vsyncadd [#allocation7], 0
      %s26 = sshll.u32 %s1, 4
      %s27 = int_to_ptr.hbm [resolvable:$true] %s26
      %s28 = sshll.u32 [#allocation6], 4
      %s29 = int_to_ptr.vmem [resolvable:$true] %s28
      %31 = dma.hbm_to_vmem [thread:$0]  %s27, 128, %s29, [#allocation7]
    $region9: #{tpu_custom_call.1} parent=1 // pred_fallthru
      _
    // Predicated region
    $region10: #{tpu_custom_call.1} parent=1 // pred_check
      _
    $region11: #{tpu_custom_call.1} parent=1 // pred_check_branch
      %33 = sbr.rel (0) target = $region13
    $region12: #{tpu_custom_call.1} parent=1 // pred_region
      %35 = dma.done [#allocation4], 128
    $region13: #{tpu_custom_call.1} parent=1 // pred_fallthru
      _
    // Predicated region
    $region14: #{tpu_custom_call.1} parent=1 // pred_check
      _
    $region15: #{tpu_custom_call.1} parent=1 // pred_check_branch
      %37 = sbr.rel (0) target = $region17
    $region16: #{tpu_custom_call.1} parent=1 // pred_region
      %39 = dma.done [#allocation7], 128
    $region17: #{tpu_custom_call.1} parent=1 // pred_fallthru
      _
    %p40 = scmp.eq.s32.totalorder 0, 0
    // Predicated region
    $region18: #{tpu_custom_call.1} parent=1 // pred_check
      %p41 = pneg %p40
    $region19: #{tpu_custom_call.1} parent=1 // pred_check_branch
      %43 = sbr.rel (%p41) target = $region21
    $region20: #{tpu_custom_call.1} parent=1 // pred_region
      %vm44 = vcmask 64512
      %45 = vst.msk [vmem:[#allocation2] sm:$0xff] %vm44, 0.0
    $region21: #{tpu_custom_call.1} parent=1 // pred_fallthru
      _
    %p46 = scmp.lt.s32.totalorder 0, 0
    // Predicated region
    $region22: #{tpu_custom_call.1} parent=1 // pred_check
      %p47 = pneg %p46
    $region23: #{tpu_custom_call.1} parent=1 // pred_check_branch
      %49 = sbr.rel (%p47) target = $region25
    $region24: #{tpu_custom_call.1} parent=1 // pred_region
      %v50 = vld [vmem:[#allocation3] sm:$0xff]
      %v51 = vld [vmem:[#allocation6] sm:$0xff]
      %v52 = vmul.f32 %v50, %v50
      %53 = vadd.xlane.f32.xlu0 %v52
      %v54 = vpop.xlane.xlu0 %53
      %v55 = vmul.f32 %v51, %v51
      %56 = vadd.xlane.f32.xlu0 %v55
      %v57 = vpop.xlane.xlu0 %56
      %58 = vmatpush.xpose.msra.mxu0 0.0
      %59 = vmatpush.xpose.msra.mxu0 0.0
      %60 = vmatpush.xpose.msra.mxu0 0.0
      %61 = vmatpush.xpose.msra.mxu0 0.0
      %62 = vmatpush.xpose.msra.mxu0 0.0
      %63 = vmatpush.xpose.msra.mxu0 0.0
      %64 = vmatpush.xpose.msra.mxu0 0.0
      %65 = vmatpush.xpose.msra.mxu0 0.0
      %66 = vmatpush.xpose.msra.mxu0 0.0
      %67 = vmatpush.xpose.msra.mxu0 0.0
      %68 = vmatpush.xpose.msra.mxu0 0.0
      %69 = vmatpush.xpose.msra.mxu0 0.0
      %70 = vmatpush.xpose.msra.mxu0 0.0
      %71 = vmatpush.xpose.msra.mxu0 0.0
      %72 = vmatpush.xpose.msra.mxu0 0.0
      %73 = vmatpush.xpose.msra.mxu0 %v51
      %74 = vmatmul.f32.gmra.mxu0 %v50
      %v75 = vpop.f32.mrf.mxu0
      %v76 = vadd.f32 0.0, %v75
      %77 = vdwg.mxu0
      %78 = vxpose.xlu0.b32.start [1/16] %v57, 128
      %79 = vxpose.xlu0.b32.cont [2/16] 0.0, 128
      %80 = vxpose.xlu0.b32.cont [3/16] 0.0, 128
      %81 = vxpose.xlu0.b32.cont [4/16] 0.0, 128
      %82 = vxpose.xlu0.b32.cont [5/16] 0.0, 128
      %83 = vxpose.xlu0.b32.cont [6/16] 0.0, 128
      %84 = vxpose.xlu0.b32.cont [7/16] 0.0, 128
      %85 = vxpose.xlu0.b32.cont [8/16] 0.0, 128
      %86 = vxpose.xlu0.b32.cont [9/16] 0.0, 128
      %87 = vxpose.xlu0.b32.cont [10/16] 0.0, 128
      %88 = vxpose.xlu0.b32.cont [11/16] 0.0, 128
      %89 = vxpose.xlu0.b32.cont [12/16] 0.0, 128
      %90 = vxpose.xlu0.b32.cont [13/16] 0.0, 128
      %91 = vxpose.xlu0.b32.cont [14/16] 0.0, 128
      %92 = vxpose.xlu0.b32.cont [15/16] 0.0, 128
      %93 = vxpose.xlu0.b32.end [16/16] 0.0, 128
      %v94 = vpop.trf.xlu0
      %v95 = vpop.trf.xlu0
      %v96 = vpop.trf.xlu0
      %v97 = vpop.trf.xlu0
      %v98 = vpop.trf.xlu0
      %v99 = vpop.trf.xlu0
      %v100 = vpop.trf.xlu0
      %v101 = vpop.trf.xlu0
      %v102 = vpop.trf.xlu0
      %v103 = vpop.trf.xlu0
      %v104 = vpop.trf.xlu0
      %v105 = vpop.trf.xlu0
      %v106 = vpop.trf.xlu0
      %v107 = vpop.trf.xlu0
      %v108 = vpop.trf.xlu0
      %v109 = vpop.trf.xlu0
      %v110 = vperm.slane %v94, 0
      %v111 = vadd.f32 %v54, %v110
      %v112 = vmul.f32 %v76, 2.0
      %v113 = vsub.f32 %v111, %v112
      %v114 = vadd.f32 %v113, 0.001
      %v115 = vrsqrt.pop %v114
      %v116 = vmul.f32 %v115, %v114
      %v117 = vmul.f32 %v116, %v115
      %v118 = vmul.f32 0.5, %v117
      %v119 = vsub.f32 1.5, %v118
      %v120 = vmul.f32 %v115, %v119
      %v121 = vmul.f32 %v114, %v120
      %vm122 = vcmp.eq.f32.partialorder %v114, inf
      %v123 = vsel %vm122, %v114, %v121
      %vm124 = vcmp.eq.f32.partialorder %v114, 0.0
      %v125 = vand.u32 %v114, 2147483648
      %v126 = vsel %vm124, %v125, %v123
      %v127 = vadd.f32 %v126, 1e-06
      %v128 = vsub.f32 1.0, %v127
      %v129 = vmax.f32 %v128, 0.0
      %v130 = vld [vmem:[#allocation2] sm:$0xff]
      %v131 = vadd.f32 %v130, %v129
      %vm132 = vcmask 64512
      %133 = vst.msk [vmem:[#allocation2] sm:$0xff] %vm132, %v131
    $region25: #{tpu_custom_call.1} parent=1 // pred_fallthru
      _
    %p134 = scmp.eq.s32.totalorder 0, 0
    // Predicated region
    $region26: #{tpu_custom_call.1} parent=1 // pred_check
      %p135 = pneg %p134
    $region27: #{tpu_custom_call.1} parent=1 // pred_check_branch
      %137 = sbr.rel (%p135) target = $region29
    $region28: #{tpu_custom_call.1} parent=1 // pred_region
      %v138 = vld [vmem:[#allocation3] sm:$0xff]
      %v139 = vld [vmem:[#allocation6] sm:$0xff]
      %v140 = vmul.f32 %v138, %v138
      %141 = vadd.xlane.f32.xlu0 %v140
      %v142 = vpop.xlane.xlu0 %141
      %v143 = vmul.f32 %v139, %v139
      %144 = vadd.xlane.f32.xlu0 %v143
      %v145 = vpop.xlane.xlu0 %144
      %146 = vmatpush.xpose.msra.mxu0 0.0
      %147 = vmatpush.xpose.msra.mxu0 0.0
      %148 = vmatpush.xpose.msra.mxu0 0.0
      %149 = vmatpush.xpose.msra.mxu0 0.0
      %150 = vmatpush.xpose.msra.mxu0 0.0
      %151 = vmatpush.xpose.msra.mxu0 0.0
      %152 = vmatpush.xpose.msra.mxu0 0.0
      %153 = vmatpush.xpose.msra.mxu0 0.0
      %154 = vmatpush.xpose.msra.mxu0 0.0
      %155 = vmatpush.xpose.msra.mxu0 0.0
      %156 = vmatpush.xpose.msra.mxu0 0.0
      %157 = vmatpush.xpose.msra.mxu0 0.0
      %158 = vmatpush.xpose.msra.mxu0 0.0
      %159 = vmatpush.xpose.msra.mxu0 0.0
      %160 = vmatpush.xpose.msra.mxu0 0.0
      %161 = vmatpush.xpose.msra.mxu0 %v139
      %162 = vmatmul.f32.gmra.mxu0 %v138
      %v163 = vpop.f32.mrf.mxu0
      %v164 = vadd.f32 0.0, %v163
      %165 = vdwg.mxu0
      %166 = vxpose.xlu0.b32.start [1/16] %v145, 128
      %167 = vxpose.xlu0.b32.cont [2/16] 0.0, 128
      %168 = vxpose.xlu0.b32.cont [3/16] 0.0, 128
      %169 = vxpose.xlu0.b32.cont [4/16] 0.0, 128
      %170 = vxpose.xlu0.b32.cont [5/16] 0.0, 128
      %171 = vxpose.xlu0.b32.cont [6/16] 0.0, 128
      %172 = vxpose.xlu0.b32.cont [7/16] 0.0, 128
      %173 = vxpose.xlu0.b32.cont [8/16] 0.0, 128
      %174 = vxpose.xlu0.b32.cont [9/16] 0.0, 128
      %175 = vxpose.xlu0.b32.cont [10/16] 0.0, 128
      %176 = vxpose.xlu0.b32.cont [11/16] 0.0, 128
      %177 = vxpose.xlu0.b32.cont [12/16] 0.0, 128
      %178 = vxpose.xlu0.b32.cont [13/16] 0.0, 128
      %179 = vxpose.xlu0.b32.cont [14/16] 0.0, 128
      %180 = vxpose.xlu0.b32.cont [15/16] 0.0, 128
      %181 = vxpose.xlu0.b32.end [16/16] 0.0, 128
      %v182 = vpop.trf.xlu0
      %v183 = vpop.trf.xlu0
      %v184 = vpop.trf.xlu0
      %v185 = vpop.trf.xlu0
      %v186 = vpop.trf.xlu0
      %v187 = vpop.trf.xlu0
      %v188 = vpop.trf.xlu0
      %v189 = vpop.trf.xlu0
      %v190 = vpop.trf.xlu0
      %v191 = vpop.trf.xlu0
      %v192 = vpop.trf.xlu0
      %v193 = vpop.trf.xlu0
      %v194 = vpop.trf.xlu0
      %v195 = vpop.trf.xlu0
      %v196 = vpop.trf.xlu0
      %v197 = vpop.trf.xlu0
      %v198 = vperm.slane %v182, 0
      %v199 = vadd.f32 %v142, %v198
      %v200 = vmul.f32 %v164, 2.0
      %v201 = vsub.f32 %v199, %v200
      %v202 = vadd.f32 %v201, 0.001
      %v203 = vrsqrt.pop %v202
      %v204 = vmul.f32 %v203, %v202
      %v205 = vmul.f32 %v204, %v203
      %v206 = vmul.f32 0.5, %v205
      %v207 = vsub.f32 1.5, %v206
      %v208 = vmul.f32 %v203, %v207
      %v209 = vmul.f32 %v202, %v208
      %vm210 = vcmp.eq.f32.partialorder %v202, inf
      %v211 = vsel %vm210, %v202, %v209
      %vm212 = vcmp.eq.f32.partialorder %v202, 0.0
      %v213 = vand.u32 %v202, 2147483648
      %v214 = vsel %vm212, %v213, %v211
      %v215 = vadd.f32 %v214, 1e-06
      %v216 = vsub.f32 1.0, %v215
      %v217 = vmax.f32 %v216, 0.0
      %s218 = smul.u32 0, 8
      %v219 = vlaneseq
      %v220 = vshrl.u32 %v219, 7
      %v221 = vstv %s218
      %v222 = vadd.s32 %v221, %v220
      %s223 = smul.u32 0, 8
      %v224 = vlaneseq
      %v225 = vand.u32 %v224, 127
      %v226 = vstv %s223
      %v227 = vadd.s32 %v226, %v225
      %vm228 = vcmp.lt.s32.totalorder %v222, %v227
      %v229 = vld [vmem:[#allocation2] sm:$0xff]
      %v230 = vsel %vm228, %v217, 0.0
      %v231 = vadd.f32 %v229, %v230
      %vm232 = vcmask 64512
      %233 = vst.msk [vmem:[#allocation2] sm:$0xff] %vm232, %v231
    $region29: #{tpu_custom_call.1} parent=1 // pred_fallthru
      _
    // Predicated region
    $region30: #{tpu_custom_call.1} parent=1 // pred_check
      %p234 = pneg %p40
    $region31: #{tpu_custom_call.1} parent=1 // pred_check_branch
      %236 = sbr.rel (%p234) target = $region33
    $region32: #{tpu_custom_call.1} parent=1 // pred_region
      %v237 = vld [vmem:[#allocation2] sm:$0xff]
      %vm238 = vcmask 64512
      %v239 = vsel %vm238, %v237, 0.0
      %240 = vadd.xlane.f32.xlu0 %v239
      %v241 = vpop.xlane.xlu0 %240
      %v242 = vrot.slane %v241, 4
      %v243 = vadd.f32 %v241, %v242
      %v244 = vrot.slane %v243, 2
      %v245 = vadd.f32 %v243, %v244
      %v246 = vrot.slane %v245, 1
      %v247 = vadd.f32 %v245, %v246
      %s248 = vtos %v247
      %v249 = vstv %s248
      %v250 = vadd.f32 %v249, 0.0
      %251 = vst [vmem:[#allocation8] sm:$0xff] %v250
    $region33: #{tpu_custom_call.1} parent=1 // pred_fallthru
      _
    // Predicated region
    $region34: #{tpu_custom_call.1} parent=1 // pred_check
      _
    $region35: #{tpu_custom_call.1} parent=1 // pred_check_branch
      %253 = sbr.rel (0) target = $region37
    $region36: #{tpu_custom_call.1} parent=1 // pred_region
      %255 = vsyncadd [#allocation5], 0
      %s257 = sshll.u32 [#allocation8], 4
      %s258 = int_to_ptr.vmem [resolvable:$true] %s257
      %s259 = sshll.u32 %s2, 4
      %s260 = int_to_ptr.hbm [resolvable:$true] %s259
      %262 = dma.vmem_to_hbm [thread:$0]  %s258, 128, %s260, [#allocation5]
    $region37: #{tpu_custom_call.1} parent=1 // pred_fallthru
      _
    // Predicated region
    $region38: #{tpu_custom_call.1} parent=1 // pred_check
      _
    $region39: #{tpu_custom_call.1} parent=1 // pred_check_branch
      %264 = sbr.rel (0) target = $region41
    $region40: #{tpu_custom_call.1} parent=1 // pred_region
      %266 = dma.done [#allocation5], 128
    $region41: #{tpu_custom_call.1} parent=1 // pred_fallthru
      _
    %267 = vsyncpa [#allocation4], 1
    %268 = vsyncpa [#allocation7], 1
    %269 = vsyncpa [#allocation5], 1

</llo_original>
